<compile_context>
chip_gen: v5e
topology: v5e:2x2
jax: 0.10.0
libtpu: 0.0.40
codegen_flags: <defaults>
</compile_context>

<pallas_src>
import functools

import jax
import jax.numpy as jnp
from jax.experimental import pallas as pl
from jax.experimental.pallas import tpu as pltpu


def _bilinear_matrix(out_size: int, in_size: int) -> jnp.ndarray:
    """(out_size, in_size) matrix reproducing F.interpolate(mode='bilinear',
    align_corners=False) along a single axis (applied per-channel)."""
    scale = in_size / out_size
    dst = jnp.arange(out_size, dtype=jnp.float32)
    src = jnp.maximum((dst + 0.5) * scale - 0.5, 0.0)
    i0 = jnp.clip(jnp.floor(src).astype(jnp.int32), 0, in_size - 1)
    i1 = jnp.minimum(i0 + 1, in_size - 1)
    w1 = src - i0.astype(jnp.float32)
    w0 = 1.0 - w1
    rows = jnp.arange(out_size)
    mat = jnp.zeros((out_size, in_size), jnp.float32)
    mat = mat.at[rows, i0].add(w0)
    mat = mat.at[rows, i1].add(w1)
    return mat


def _tpu_vmem_params():
    """(chunk VMEM budget bytes, vmem_limit_bytes) tuned per TPU generation.

    v5e: 16 MiB scoped default / 128 MiB physical -> small chunks; the win comes
         from bf16 DMA + lane-dense layout rather than larger tiles.
    v6e: 128 MiB physical -> large chunks amortize the ~0.35 us/step overhead.
    v7x: only 64 MiB physical VMEM per core -> tight, explicit budget.
    """
    try:
        kind = jax.devices()[0].device_kind.lower()
    except Exception:  # pragma: no cover - be robust on exotic runtimes
        kind = ""
    if "v7" in kind:
        return 20 << 20, 44 << 20
    if "v6" in kind:
        return 32 << 20, 96 << 20
    if "v5 lite" in kind or "v5e" in kind or "v5lite" in kind:
        return 10 << 20, 64 << 20
    return 16 << 20, 64 << 20


def _pick_bt(B, C, Hi, Wi, H, W, budget_bytes):
    """Largest batch chunk `bt` (divisor of B) whose VMEM working set fits the
    per-generation budget.  Blocks are (bt*C, Hi*Wi) / (bt*C, H*W); a chunked
    second-minor dim must be a multiple of 8 (or span the full B*C) to keep the
    (8,128) tiling legal."""
    hw, hiwi = H * W, Hi * Wi
    # bf16 f/label input blocks (x2 double buffering) + ~3 live f32 (G, H*W)
    # intermediates (upsampled y, upcast label, residual slab), per batch elem.
    per_b = C * (2 * 2 * hiwi + 2 * 2 * hw + 3 * 4 * hw)
    fixed = 2 * 2 * hiwi * hw                 # bf16 kron matrix (double buffered)
    legal = [bt for bt in range(1, B + 1)
             if B % bt == 0 and (bt == B or (bt * C) % 8 == 0)]
    fits = [bt for bt in legal if fixed + bt * per_b <= budget_bytes]
    return max(fits) if fits else min(legal)


def _loss_kernel(f_ref, lab_ref, m_ref, out_ref, *, bt, C):
    """One grid step = one chunk of `bt` batch elements (G = bt*C rows).

       f_ref   : (G, Hi*Wi)    bf16  noisy f_score, rows ordered (b, c)
       lab_ref : (G, H*W)      bf16  label / sal, rows ordered (b, c)
       m_ref   : (Hi*Wi, H*W)  bf16  kron(wh, ww)^T bilinear-interp matrix
       out_ref : (1, 1, 1)     f32   per-chunk partial sum of squared residuals
    """
    G = bt * C

    # (1) Bilinear upsample of the whole chunk as ONE lane-dense MXU matmul:
    #     (G, Hi*Wi) @ (Hi*Wi, H*W) -> (G, H*W); bf16 operands, f32 accumulate.
    y = jnp.dot(f_ref[...], m_ref[...], preferred_element_type=jnp.float32)

    # (2) Per-batch-element max (MSE_loss normalization): one full-width lane
    #     reduce (+ tiny cross-channel max when C > 1), then EUP approx recip.
    m_g = jnp.max(y, axis=1, keepdims=True)                        # (G, 1)
    if C > 1:
        m_b = jnp.max(m_g.reshape(bt, C), axis=1, keepdims=True)   # (bt, 1)
        m_g = jnp.broadcast_to(m_b, (bt, C)).reshape(G, 1)
    inv = pl.reciprocal(m_g + 1e-4, approx=True)                   # (G, 1)

    # (3) Squared normalized residuals on the lane-dense (G, H*W) slab.
    #     Label ships as bf16 over DMA and is upcast here (VPU math stays f32);
    #     divides are EUP approx reciprocal-multiplies.
    g = lab_ref[...].astype(jnp.float32)
    d = (y * inv - g) * pl.reciprocal(1.1 - g, approx=True) + 1e-4
    part = jnp.sum(d * d, axis=1, keepdims=True)                   # (G, 1) lane reduce
    out_ref[...] = jnp.sum(part, axis=0, keepdims=True).reshape(1, 1, 1)


def fb_loss(label, f_score, fix=None, nonfix=None, *, noise_key=None, weight=0.1):
    """Pallas implementation of Loss.forward (the 0.025 * MSE_loss branch)."""
    del fix, nonfix, weight
    # TODO(synk): calc_loss_unisal (kld/cc/sfne over fix/nonfix) is not defined in
    # the provided module; only the 0.025 * MSE_loss term of the loss is computed.
    label = label.astype(jnp.float32)
    f_score = f_score.astype(jnp.float32)
    if noise_key is not None:
        # torch.randn * 1e-7 tie-breaker noise.  Kept wrapper-side (the f_score
        # stream is tiny: Hi*Wi << H*W) so it fuses with the reshape/cast below.
        # TODO(synk): could be generated in-kernel via pltpu.prng_seed +
        # pltpu.stateful_normal to drop the extra (small) HBM round trip.
        f_score = f_score + 1e-7 * jax.random.normal(noise_key, f_score.shape, jnp.float32)

    B, C, Hi, Wi = f_score.shape
    _, _, H, W = label.shape

    # Separable bilinear interpolation folded into ONE (Hi*Wi, H*W) matrix:
    #   y[g, h*W + w] = sum_{p,q} wh[h,p] * ww[w,q] * f[g, p*Wi + q]
    # i.e. y = f2 @ kron(wh, ww)^T = f2 @ kron(wh.T, ww.T).
    # TODO(synk): for very large H*W*Hi*Wi (kron matrix beyond a few MiB) fall
    # back to two separable matmuls with an in-kernel transpose instead.
    wh = _bilinear_matrix(H, Hi)                          # (H, Hi)
    ww = _bilinear_matrix(W, Wi)                          # (W, Wi)
    mt = jnp.kron(wh.T, ww.T).astype(jnp.bfloat16)        # (Hi*Wi, H*W)

    budget, vmem_limit = _tpu_vmem_params()
    bt = _pick_bt(B, C, Hi, Wi, H, W, budget)
    nb = B // bt

    # Lane-dense, free row-major reshapes + bf16 casts (halve HBM->VMEM bytes;
    # DEFAULT MXU precision truncates the matmul operands to bf16 anyway).
    f2 = f_score.reshape(B * C, Hi * Wi).astype(jnp.bfloat16)
    lab2 = label.reshape(B * C, H * W).astype(jnp.bfloat16)

    kernel = functools.partial(_loss_kernel, bt=bt, C=C)

    partials = pl.pallas_call(
        kernel,
        out_shape=jax.ShapeDtypeStruct((nb, 1, 1), jnp.float32),
        grid_spec=pltpu.PrefetchScalarGridSpec(
            num_scalar_prefetch=0,
            grid=(nb,),
            in_specs=[
                pl.BlockSpec((bt * C, Hi * Wi), lambda i: (i, 0)),
                pl.BlockSpec((bt * C, H * W), lambda i: (i, 0)),
                pl.BlockSpec((Hi * Wi, H * W), lambda i: (0, 0)),
            ],
            out_specs=pl.BlockSpec((1, 1, 1), lambda i: (i, 0, 0)),
        ),
        compiler_params=pltpu.CompilerParams(
            dimension_semantics=("parallel",),   # batch chunks are independent
            vmem_limit_bytes=vmem_limit),
    )(f2, lab2, mt)

    # Per-chunk partial sums -> mean over all B*C*H*W elements, 0.025 weight.
    return jnp.sum(partials) * (0.025 / (B * C * H * W))


def _reference_loss(label, f_score, noise_key):
    """Pure-JAX reference of the same (0.025 * MSE_loss) term, f32-accurate."""
    f = f_score + 1e-7 * jax.random.normal(noise_key, f_score.shape, jnp.float32)
    B, _, Hi, Wi = f.shape
    _, _, H, W = label.shape
    wh = _bilinear_matrix(H, Hi)
    ww = _bilinear_matrix(W, Wi)
    y = jnp.einsum('hp,bcpq,wq->bchw', wh, f, ww,
                   precision=jax.lax.Precision.HIGHEST)
    sal = y.reshape(B, -1)
    m = jnp.max(sal, axis=1, keepdims=True)
    sal = sal / (m + 1e-4)
    gt = label.reshape(B, -1)
    return 0.025 * jnp.mean(jnp.square((sal - gt) / (1.1 - gt) + 1e-4))


if __name__ == "__main__":
    key = jax.random.PRNGKey(0)
    k_lab, k_pred, k_fix = jax.random.split(key, 3)
    noise_key = jax.random.PRNGKey(42)

    B, C, H, W = 4, 1, 32, 32       # label spatial size (single-channel saliency)
    Hi, Wi = 16, 16                 # f_score spatial size (upsampled to H, W)

    label = jax.random.uniform(k_lab, (B, C, H, W), jnp.float32)
    f_score = jax.random.uniform(k_pred, (B, C, Hi, Wi), jnp.float32)
    fix = (jax.random.uniform(k_fix, (B, C, H, W)) > 0.9).astype(jnp.float32)
    nonfix = 1.0 - fix

    loss = jax.block_until_ready(
        fb_loss(label, f_score, fix, nonfix, noise_key=noise_key))

    ref = jax.block_until_ready(_reference_loss(label, f_score, noise_key))
    # bf16 MXU operands + bf16 label DMA + approx EUP reciprocals vs. an
    # f32-exact reference, hence the slightly loose rtol.
    assert jnp.allclose(loss, ref, rtol=5e-2, atol=1e-4), (float(loss), float(ref))

    print("KERNEL_OK")
</pallas_src>

<mosaic_0001>
module attributes {stable_mosaic.version = 11 : i64} {
  func.func @_loss_kernel(%arg0: i32, %arg1: memref<4x256xbf16, #tpu.memory_space<vmem>>, %arg2: memref<4x1024xbf16, #tpu.memory_space<vmem>>, %arg3: memref<256x1024xbf16, #tpu.memory_space<vmem>>, %arg4: memref<1x1x1xf32, #tpu.memory_space<vmem>>) attributes {dimension_semantics = [#tpu.dimension_semantics<parallel>], iteration_bounds = array<i64: 1>, scalar_prefetch = 0 : i64, scratch_operands = 0 : i64, tpu.core_type = #tpu.core_type<tc>, window_params = [{transform_indices = @transform_0, window_bounds = array<i64: 4, 256>}, {transform_indices = @transform_1, window_bounds = array<i64: 4, 1024>}, {pipeline_mode = #tpu.pipeline_mode<synchronous>, transform_indices = @transform_2, window_bounds = array<i64: 256, 1024>}, {transform_indices = @transform_3, window_bounds = array<i64: 1, 1, 1>}]} {
    %c0 = arith.constant 0 : index
    %c0_0 = arith.constant 0 : index
    %0 = vector.load %arg1[%c0, %c0_0] : memref<4x256xbf16, #tpu.memory_space<vmem>>, vector<4x256xbf16>
    %c0_1 = arith.constant 0 : index
    %c0_2 = arith.constant 0 : index
    %1 = vector.load %arg3[%c0_1, %c0_2] : memref<256x1024xbf16, #tpu.memory_space<vmem>>, vector<256x1024xbf16>
    %cst = arith.constant dense<0.000000e+00> : vector<4x1024xf32>
    %2 = tpu.matmul %0, %1, %cst {dimension_numbers = #tpu.dot_dimension_numbers<[1], [0], [0], [1], [0, 0, 1, 1], [], []>} : vector<4x256xbf16>, vector<256x1024xbf16>, vector<4x1024xf32> -> vector<4x1024xf32>
    %cst_3 = arith.constant dense<0xFF800000> : vector<4xf32>
    %3 = vector.multi_reduction <maximumf>, %2, %cst_3 [1] : vector<4x1024xf32> to vector<4xf32>
    %4 = vector.shape_cast %3 : vector<4xf32> to vector<4x1xf32>
    %cst_4 = arith.constant 9.99999974E-5 : f32
    %5 = vector.broadcast %cst_4 : f32 to vector<4x1xf32>
    %6 = arith.addf %4, %5 : vector<4x1xf32>
    %7 = tpu.reciprocal %6 {approx = true} : vector<4x1xf32> -> vector<4x1xf32>
    %c0_5 = arith.constant 0 : index
    %c0_6 = arith.constant 0 : index
    %8 = vector.load %arg2[%c0_5, %c0_6] : memref<4x1024xbf16, #tpu.memory_space<vmem>>, vector<4x1024xbf16>
    %9 = arith.extf %8 : vector<4x1024xbf16> to vector<4x1024xf32>
    %10 = vector.broadcast %7 : vector<4x1xf32> to vector<4x1024xf32>
    %11 = arith.mulf %2, %10 : vector<4x1024xf32>
    %12 = arith.subf %11, %9 : vector<4x1024xf32>
    %cst_7 = arith.constant 1.100000e+00 : f32
    %13 = vector.broadcast %cst_7 : f32 to vector<4x1024xf32>
    %14 = arith.subf %13, %9 : vector<4x1024xf32>
    %15 = tpu.reciprocal %14 {approx = true} : vector<4x1024xf32> -> vector<4x1024xf32>
    %16 = arith.mulf %12, %15 : vector<4x1024xf32>
    %cst_8 = arith.constant 9.99999974E-5 : f32
    %17 = vector.broadcast %cst_8 : f32 to vector<4x1024xf32>
    %18 = arith.addf %16, %17 : vector<4x1024xf32>
    %19 = arith.mulf %18, %18 : vector<4x1024xf32>
    %cst_9 = arith.constant dense<0.000000e+00> : vector<4xf32>
    %20 = vector.multi_reduction <add>, %19, %cst_9 [1] : vector<4x1024xf32> to vector<4xf32>
    %21 = vector.shape_cast %20 : vector<4xf32> to vector<4x1xf32>
    %cst_10 = arith.constant dense<0.000000e+00> : vector<1xf32>
    %22 = vector.multi_reduction <add>, %21, %cst_10 [0] : vector<4x1xf32> to vector<1xf32>
    %23 = vector.shape_cast %22 : vector<1xf32> to vector<1x1xf32>
    %24 = vector.shape_cast %23 : vector<1x1xf32> to vector<1x1x1xf32>
    %c0_11 = arith.constant 0 : index
    %c0_12 = arith.constant 0 : index
    %c0_13 = arith.constant 0 : index
    %25 = vector.load %arg4[%c0_11, %c0_12, %c0_13] : memref<1x1x1xf32, #tpu.memory_space<vmem>>, vector<1x1x1xf32>
    tpu.vector_store %arg4[%c0_11, %c0_12, %c0_13], %24 {strides = array<i32>} : memref<1x1x1xf32, #tpu.memory_space<vmem>>, vector<1x1x1xf32>,
    return
  }
  func.func @transform_0(%arg0: i32) -> (i32, i32) {
    %c0_i32 = arith.constant 0 : i32
    %c0_i32_0 = arith.constant 0 : i32
    return %arg0, %c0_i32 : i32, i32
  }
  func.func @transform_1(%arg0: i32) -> (i32, i32) {
    %c0_i32 = arith.constant 0 : i32
    %c0_i32_0 = arith.constant 0 : i32
    return %arg0, %c0_i32 : i32, i32
  }
  func.func @transform_2(%arg0: i32) -> (i32, i32) {
    %c0_i32 = arith.constant 0 : i32
    %c0_i32_0 = arith.constant 0 : i32
    %c0_i32_1 = arith.constant 0 : i32
    return %c0_i32, %c0_i32_0 : i32, i32
  }
  func.func @transform_3(%arg0: i32) -> (i32, i32, i32) {
    %c0_i32 = arith.constant 0 : i32
    %c0_i32_0 = arith.constant 0 : i32
    %c0_i32_1 = arith.constant 0 : i32
    return %arg0, %c0_i32, %c0_i32_0 : i32, i32, i32
  }
}

</mosaic_0001>

<llo_original>
// kernel: tpu_custom_call.1
$region0: #{tpu_custom_call.1}
  #allocation0 [shape = 'u32[]', space=smem, size = 0x4, offset = 0x4, fixed_abs, tag = 'smem constant byte address 0x4 - core index']
  #allocation1 [shape = 'u32[72,128]{1,0:T(1,128)}', space=vmem, size = 0x9000, scoped, tag = 'internal scratch']
  %s0 = inlined_call_operand.hbm [shape: bf16[4,256], index: 0, kind: input, shape index: {}]
  %s1 = inlined_call_operand.hbm [shape: bf16[4,1024], index: 1, kind: input, shape index: {}]
  %s2 = inlined_call_operand.hbm [shape: bf16[256,1024], index: 2, kind: input, shape index: {}]
  %s3 = inlined_call_operand.hbm [shape: f32[1,1,1], index: 3, kind: output, shape index: {}]
  %s4 = sld [smem:[#allocation0]]
  $region34: #{tpu_custom_call.1} parent=0
    _
  %s6 = ssub.s32 1, %s4
  %s7 = scalar_select 0, %s6, %s4
  $region1: #{tpu_custom_call.1} parent=0
    #allocation2 [shape = 'u8[2048]{0}', space=vmem, size = 0x800, scoped, tag = 'input window, operand 0, single buffered']
    #allocation3 [shape = 's32[1]{0}', space=sflag, size = 0x4, scoped, tag = 'scoped memory for tpu_custom_call.1']
    #allocation4 [shape = 's32[1]{0}', space=sflag, size = 0x4, scoped, tag = 'scoped memory for tpu_custom_call.1']
    #allocation5 [shape = 'u8[8192]{0}', space=vmem, size = 0x2000, scoped, tag = 'input window, operand 1, single buffered']
    #allocation6 [shape = 's32[1]{0}', space=sflag, size = 0x4, scoped, tag = 'scoped memory for tpu_custom_call.1']
    #allocation7 [shape = 'u8[524288]{0}', space=vmem, size = 0x80000, scoped, tag = 'input window, operand 2, single buffered']
    #allocation8 [shape = 'u8[512]{0}', space=vmem, size = 0x400, scoped, tag = 'output window, operand 0, single buffered']
    %8 = vsyncpa [#allocation3], 0
    %9 = vsyncpa [#allocation6], 0
    %10 = vsyncpa [#allocation4], 0
    // Predicated region
    $region2: #{tpu_custom_call.1} parent=1 // pred_check
      _
    $region3: #{tpu_custom_call.1} parent=1 // pred_check_branch
      %12 = sbr.rel (0) target = $region5
    $region4: #{tpu_custom_call.1} parent=1 // pred_region
      %14 = vsyncadd [#allocation3], 0
      %s16 = sshll.u32 %s0, 4
      %s17 = int_to_ptr.hbm [resolvable:$true] %s16
      %s18 = sshll.u32 [#allocation2], 4
      %s19 = int_to_ptr.vmem [resolvable:$true] %s18
      %21 = dma.hbm_to_vmem [thread:$0]  %s17, 64, %s19, [#allocation3]
    $region5: #{tpu_custom_call.1} parent=1 // pred_fallthru
      _
    // Predicated region
    $region6: #{tpu_custom_call.1} parent=1 // pred_check
      _
    $region7: #{tpu_custom_call.1} parent=1 // pred_check_branch
      %23 = sbr.rel (0) target = $region9
    $region8: #{tpu_custom_call.1} parent=1 // pred_region
      %25 = vsyncadd [#allocation6], 0
      %s27 = sshll.u32 %s1, 4
      %s28 = int_to_ptr.hbm [resolvable:$true] %s27
      %s29 = sshll.u32 [#allocation5], 4
      %s30 = int_to_ptr.vmem [resolvable:$true] %s29
      %32 = dma.hbm_to_vmem [thread:$0]  %s28, 256, %s30, [#allocation6]
    $region9: #{tpu_custom_call.1} parent=1 // pred_fallthru
      _
    // Predicated region
    $region10: #{tpu_custom_call.1} parent=1 // pred_check
      _
    $region11: #{tpu_custom_call.1} parent=1 // pred_check_branch
      %34 = sbr.rel (0) target = $region13
    $region12: #{tpu_custom_call.1} parent=1 // pred_region
      %36 = vsyncadd [#allocation6], 0
      %s37 = sshll.u32 %s2, 4
      %s38 = int_to_ptr.hbm [resolvable:$true] %s37
      %s39 = sshll.u32 [#allocation7], 4
      %s40 = int_to_ptr.vmem [resolvable:$true] %s39
      %45 = dma.hbm_to_vmem [thread:$0]  %s38, 16384, %s40, [#allocation6], 512, 512, 32
    $region13: #{tpu_custom_call.1} parent=1 // pred_fallthru
      _
    // Predicated region
    $region14: #{tpu_custom_call.1} parent=1 // pred_check
      _
    $region15: #{tpu_custom_call.1} parent=1 // pred_check_branch
      %47 = sbr.rel (0) target = $region17
    $region16: #{tpu_custom_call.1} parent=1 // pred_region
      %49 = dma.done [#allocation3], 64
    $region17: #{tpu_custom_call.1} parent=1 // pred_fallthru
      _
    // Predicated region
    $region18: #{tpu_custom_call.1} parent=1 // pred_check
      _
    $region19: #{tpu_custom_call.1} parent=1 // pred_check_branch
      %51 = sbr.rel (0) target = $region21
    $region20: #{tpu_custom_call.1} parent=1 // pred_region
      %53 = dma.done [#allocation6], 256
    $region21: #{tpu_custom_call.1} parent=1 // pred_fallthru
      _
    // Predicated region
    $region22: #{tpu_custom_call.1} parent=1 // pred_check
      _
    $region23: #{tpu_custom_call.1} parent=1 // pred_check_branch
      %55 = sbr.rel (0) target = $region25
    $region24: #{tpu_custom_call.1} parent=1 // pred_region
      %57 = dma.done [#allocation6], 16384
    $region25: #{tpu_custom_call.1} parent=1 // pred_fallthru
      _
    %v58 = vld [vmem:[#allocation2] sm:$0xf]
    %v59 = vld [vmem:[#allocation7] sm:$0xff]
    %v60 = vld [vmem:[#allocation7 + $0x8] sm:$0xff]
    %v61 = vld [vmem:[#allocation7 + $0x10] sm:$0xff]
    %v62 = vld [vmem:[#allocation7 + $0x18] sm:$0xff]
    %v63 = vld [vmem:[#allocation7 + $0x20] sm:$0xff]
    %v64 = vld [vmem:[#allocation7 + $0x28] sm:$0xff]
    %v65 = vld [vmem:[#allocation7 + $0x30] sm:$0xff]
    %v66 = vld [vmem:[#allocation7 + $0x38] sm:$0xff]
    %v67 = vld [vmem:[#allocation7 + $0x40] sm:$0xff]
    %v68 = vld [vmem:[#allocation7 + $0x48] sm:$0xff]
    %v69 = vld [vmem:[#allocation7 + $0x50] sm:$0xff]
    %v70 = vld [vmem:[#allocation7 + $0x58] sm:$0xff]
    %v71 = vld [vmem:[#allocation7 + $0x60] sm:$0xff]
    %v72 = vld [vmem:[#allocation7 + $0x68] sm:$0xff]
    %v73 = vld [vmem:[#allocation7 + $0x70] sm:$0xff]
    %v74 = vld [vmem:[#allocation7 + $0x78] sm:$0xff]
    %v75 = vld [vmem:[#allocation7 + $0x80] sm:$0xff]
    %v76 = vld [vmem:[#allocation7 + $0x88] sm:$0xff]
    %v77 = vld [vmem:[#allocation7 + $0x90] sm:$0xff]
    %v78 = vld [vmem:[#allocation7 + $0x98] sm:$0xff]
    %v79 = vld [vmem:[#allocation7 + $0xa0] sm:$0xff]
    %v80 = vld [vmem:[#allocation7 + $0xa8] sm:$0xff]
    %v81 = vld [vmem:[#allocation7 + $0xb0] sm:$0xff]
    %v82 = vld [vmem:[#allocation7 + $0xb8] sm:$0xff]
    %v83 = vld [vmem:[#allocation7 + $0xc0] sm:$0xff]
    %v84 = vld [vmem:[#allocation7 + $0xc8] sm:$0xff]
    %v85 = vld [vmem:[#allocation7 + $0xd0] sm:$0xff]
    %v86 = vld [vmem:[#allocation7 + $0xd8] sm:$0xff]
    %v87 = vld [vmem:[#allocation7 + $0xe0] sm:$0xff]
    %v88 = vld [vmem:[#allocation7 + $0xe8] sm:$0xff]
    %v89 = vld [vmem:[#allocation7 + $0xf0] sm:$0xff]
    %v90 = vld [vmem:[#allocation7 + $0xf8] sm:$0xff]
    %v91 = vld [vmem:[#allocation7 + $0x100] sm:$0xff]
    %v92 = vld [vmem:[#allocation7 + $0x108] sm:$0xff]
    %v93 = vld [vmem:[#allocation7 + $0x110] sm:$0xff]
    %v94 = vld [vmem:[#allocation7 + $0x118] sm:$0xff]
    %v95 = vld [vmem:[#allocation7 + $0x120] sm:$0xff]
    %v96 = vld [vmem:[#allocation7 + $0x128] sm:$0xff]
    %v97 = vld [vmem:[#allocation7 + $0x130] sm:$0xff]
    %v98 = vld [vmem:[#allocation7 + $0x138] sm:$0xff]
    %v99 = vld [vmem:[#allocation7 + $0x140] sm:$0xff]
    %v100 = vld [vmem:[#allocation7 + $0x148] sm:$0xff]
    %v101 = vld [vmem:[#allocation7 + $0x150] sm:$0xff]
    %v102 = vld [vmem:[#allocation7 + $0x158] sm:$0xff]
    %v103 = vld [vmem:[#allocation7 + $0x160] sm:$0xff]
    %v104 = vld [vmem:[#allocation7 + $0x168] sm:$0xff]
    %v105 = vld [vmem:[#allocation7 + $0x170] sm:$0xff]
    %v106 = vld [vmem:[#allocation7 + $0x178] sm:$0xff]
    %v107 = vld [vmem:[#allocation7 + $0x180] sm:$0xff]
    %v108 = vld [vmem:[#allocation7 + $0x188] sm:$0xff]
    %v109 = vld [vmem:[#allocation7 + $0x190] sm:$0xff]
    %v110 = vld [vmem:[#allocation7 + $0x198] sm:$0xff]
    %v111 = vld [vmem:[#allocation7 + $0x1a0] sm:$0xff]
    %v112 = vld [vmem:[#allocation7 + $0x1a8] sm:$0xff]
    %v113 = vld [vmem:[#allocation7 + $0x1b0] sm:$0xff]
    %v114 = vld [vmem:[#allocation7 + $0x1b8] sm:$0xff]
    %v115 = vld [vmem:[#allocation7 + $0x1c0] sm:$0xff]
    %v116 = vld [vmem:[#allocation7 + $0x1c8] sm:$0xff]
    %v117 = vld [vmem:[#allocation7 + $0x1d0] sm:$0xff]
    %v118 = vld [vmem:[#allocation7 + $0x1d8] sm:$0xff]
    %v119 = vld [vmem:[#allocation7 + $0x1e0] sm:$0xff]
    %v120 = vld [vmem:[#allocation7 + $0x1e8] sm:$0xff]
    %v121 = vld [vmem:[#allocation7 + $0x1f0] sm:$0xff]
    %v122 = vld [vmem:[#allocation7 + $0x1f8] sm:$0xff]
    %v123 = vld [vmem:[#allocation7 + $0x200] sm:$0xff]
    %v124 = vld [vmem:[#allocation7 + $0x208] sm:$0xff]
    %v125 = vld [vmem:[#allocation7 + $0x210] sm:$0xff]
    %v126 = vld [vmem:[#allocation7 + $0x218] sm:$0xff]
    %v127 = vld [vmem:[#allocation7 + $0x220] sm:$0xff]
    %v128 = vld [vmem:[#allocation7 + $0x228] sm:$0xff]
    %v129 = vld [vmem:[#allocation7 + $0x230] sm:$0xff]
    %v130 = vld [vmem:[#allocation7 + $0x238] sm:$0xff]
    %v131 = vld [vmem:[#allocation7 + $0x240] sm:$0xff]
    %v132 = vld [vmem:[#allocation7 + $0x248] sm:$0xff]
    %v133 = vld [vmem:[#allocation7 + $0x250] sm:$0xff]
    %v134 = vld [vmem:[#allocation7 + $0x258] sm:$0xff]
    %v135 = vld [vmem:[#allocation7 + $0x260] sm:$0xff]
    %v136 = vld [vmem:[#allocation7 + $0x268] sm:$0xff]
    %v137 = vld [vmem:[#allocation7 + $0x270] sm:$0xff]
    %v138 = vld [vmem:[#allocation7 + $0x278] sm:$0xff]
    %v139 = vld [vmem:[#allocation7 + $0x280] sm:$0xff]
    %v140 = vld [vmem:[#allocation7 + $0x288] sm:$0xff]
    %v141 = vld [vmem:[#allocation7 + $0x290] sm:$0xff]
    %v142 = vld [vmem:[#allocation7 + $0x298] sm:$0xff]
    %v143 = vld [vmem:[#allocation7 + $0x2a0] sm:$0xff]
    %v144 = vld [vmem:[#allocation7 + $0x2a8] sm:$0xff]
    %v145 = vld [vmem:[#allocation7 + $0x2b0] sm:$0xff]
    %v146 = vld [vmem:[#allocation7 + $0x2b8] sm:$0xff]
    %v147 = vld [vmem:[#allocation7 + $0x2c0] sm:$0xff]
    %v148 = vld [vmem:[#allocation7 + $0x2c8] sm:$0xff]
    %v149 = vld [vmem:[#allocation7 + $0x2d0] sm:$0xff]
    %v150 = vld [vmem:[#allocation7 + $0x2d8] sm:$0xff]
    %v151 = vld [vmem:[#allocation7 + $0x2e0] sm:$0xff]
    %v152 = vld [vmem:[#allocation7 + $0x2e8] sm:$0xff]
    %v153 = vld [vmem:[#allocation7 + $0x2f0] sm:$0xff]
    %v154 = vld [vmem:[#allocation7 + $0x2f8] sm:$0xff]
    %v155 = vld [vmem:[#allocation7 + $0x300] sm:$0xff]
    %v156 = vld [vmem:[#allocation7 + $0x308] sm:$0xff]
    %v157 = vld [vmem:[#allocation7 + $0x310] sm:$0xff]
    %v158 = vld [vmem:[#allocation7 + $0x318] sm:$0xff]
    %v159 = vld [vmem:[#allocation7 + $0x320] sm:$0xff]
    %v160 = vld [vmem:[#allocation7 + $0x328] sm:$0xff]
    %v161 = vld [vmem:[#allocation7 + $0x330] sm:$0xff]
    %v162 = vld [vmem:[#allocation7 + $0x338] sm:$0xff]
    %v163 = vld [vmem:[#allocation7 + $0x340] sm:$0xff]
    %v164 = vld [vmem:[#allocation7 + $0x348] sm:$0xff]
    %v165 = vld [vmem:[#allocation7 + $0x350] sm:$0xff]
    %v166 = vld [vmem:[#allocation7 + $0x358] sm:$0xff]
    %v167 = vld [vmem:[#allocation7 + $0x360] sm:$0xff]
    %v168 = vld [vmem:[#allocation7 + $0x368] sm:$0xff]
    %v169 = vld [vmem:[#allocation7 + $0x370] sm:$0xff]
    %v170 = vld [vmem:[#allocation7 + $0x378] sm:$0xff]
    %v171 = vld [vmem:[#allocation7 + $0x380] sm:$0xff]
    %v172 = vld [vmem:[#allocation7 + $0x388] sm:$0xff]
    %v173 = vld [vmem:[#allocation7 + $0x390] sm:$0xff]
    %v174 = vld [vmem:[#allocation7 + $0x398] sm:$0xff]
    %v175 = vld [vmem:[#allocation7 + $0x3a0] sm:$0xff]
    %v176 = vld [vmem:[#allocation7 + $0x3a8] sm:$0xff]
    %v177 = vld [vmem:[#allocation7 + $0x3b0] sm:$0xff]
    %v178 = vld [vmem:[#allocation7 + $0x3b8] sm:$0xff]
    %v179 = vld [vmem:[#allocation7 + $0x3c0] sm:$0xff]
    %v180 = vld [vmem:[#allocation7 + $0x3c8] sm:$0xff]
    %v181 = vld [vmem:[#allocation7 + $0x3d0] sm:$0xff]
    %v182 = vld [vmem:[#allocation7 + $0x3d8] sm:$0xff]
    %v183 = vld [vmem:[#allocation7 + $0x3e0] sm:$0xff]
    %v184 = vld [vmem:[#allocation7 + $0x3e8] sm:$0xff]
    %v185 = vld [vmem:[#allocation7 + $0x3f0] sm:$0xff]
    %v186 = vld [vmem:[#allocation7 + $0x3f8] sm:$0xff]
    %188 = vst [vmem:[#allocation1] ss:$4 sm:$0xff] %v58
    %v189 = vld.sshfl [vmem:[#allocation1] sm:$0xff pattern:$0x73625140]
    %v190 = vld.sshfl [vmem:[#allocation1 + $0x8] sm:$0xff pattern:$0x73625140]
    %v321 = vunpack.c.l.b16 %v59
    %v322 = vunpack.c.h.b16 %v59
    %v323 = vunpack.c.l.b16 %v60
    %v324 = vunpack.c.h.b16 %v60
    %v325 = vunpack.c.l.b16 %v61
    %v326 = vunpack.c.h.b16 %v61
    %v327 = vunpack.c.l.b16 %v62
    %v328 = vunpack.c.h.b16 %v62
    %v329 = vunpack.c.l.b16 %v63
    %v330 = vunpack.c.h.b16 %v63
    %v331 = vunpack.c.l.b16 %v64
    %v332 = vunpack.c.h.b16 %v64
    %v333 = vunpack.c.l.b16 %v65
    %v334 = vunpack.c.h.b16 %v65
    %v335 = vunpack.c.l.b16 %v66
    %v336 = vunpack.c.h.b16 %v66
    %v337 = vunpack.c.l.b16 %v67
    %v338 = vunpack.c.h.b16 %v67
    %v339 = vunpack.c.l.b16 %v68
    %v340 = vunpack.c.h.b16 %v68
    %v341 = vunpack.c.l.b16 %v69
    %v342 = vunpack.c.h.b16 %v69
    %v343 = vunpack.c.l.b16 %v70
    %v344 = vunpack.c.h.b16 %v70
    %v345 = vunpack.c.l.b16 %v71
    %v346 = vunpack.c.h.b16 %v71
    %v347 = vunpack.c.l.b16 %v72
    %v348 = vunpack.c.h.b16 %v72
    %v349 = vunpack.c.l.b16 %v73
    %v350 = vunpack.c.h.b16 %v73
    %v351 = vunpack.c.l.b16 %v74
    %v352 = vunpack.c.h.b16 %v74
    %v353 = vunpack.c.l.b16 %v75
    %v354 = vunpack.c.h.b16 %v75
    %v355 = vunpack.c.l.b16 %v76
    %v356 = vunpack.c.h.b16 %v76
    %v357 = vunpack.c.l.b16 %v77
    %v358 = vunpack.c.h.b16 %v77
    %v359 = vunpack.c.l.b16 %v78
    %v360 = vunpack.c.h.b16 %v78
    %v361 = vunpack.c.l.b16 %v79
    %v362 = vunpack.c.h.b16 %v79
    %v363 = vunpack.c.l.b16 %v80
    %v364 = vunpack.c.h.b16 %v80
    %v365 = vunpack.c.l.b16 %v81
    %v366 = vunpack.c.h.b16 %v81
    %v367 = vunpack.c.l.b16 %v82
    %v368 = vunpack.c.h.b16 %v82
    %v369 = vunpack.c.l.b16 %v83
    %v370 = vunpack.c.h.b16 %v83
    %v371 = vunpack.c.l.b16 %v84
    %v372 = vunpack.c.h.b16 %v84
    %v373 = vunpack.c.l.b16 %v85
    %v374 = vunpack.c.h.b16 %v85
    %v375 = vunpack.c.l.b16 %v86
    %v376 = vunpack.c.h.b16 %v86
    %v377 = vunpack.c.l.b16 %v87
    %v378 = vunpack.c.h.b16 %v87
    %v379 = vunpack.c.l.b16 %v88
    %v380 = vunpack.c.h.b16 %v88
    %v381 = vunpack.c.l.b16 %v89
    %v382 = vunpack.c.h.b16 %v89
    %v383 = vunpack.c.l.b16 %v90
    %v384 = vunpack.c.h.b16 %v90
    %v385 = vunpack.c.l.b16 %v91
    %v386 = vunpack.c.h.b16 %v91
    %v387 = vunpack.c.l.b16 %v92
    %v388 = vunpack.c.h.b16 %v92
    %v389 = vunpack.c.l.b16 %v93
    %v390 = vunpack.c.h.b16 %v93
    %v391 = vunpack.c.l.b16 %v94
    %v392 = vunpack.c.h.b16 %v94
    %v393 = vunpack.c.l.b16 %v95
    %v394 = vunpack.c.h.b16 %v95
    %v395 = vunpack.c.l.b16 %v96
    %v396 = vunpack.c.h.b16 %v96
    %v397 = vunpack.c.l.b16 %v97
    %v398 = vunpack.c.h.b16 %v97
    %v399 = vunpack.c.l.b16 %v98
    %v400 = vunpack.c.h.b16 %v98
    %v401 = vunpack.c.l.b16 %v99
    %v402 = vunpack.c.h.b16 %v99
    %v403 = vunpack.c.l.b16 %v100
    %v404 = vunpack.c.h.b16 %v100
    %v405 = vunpack.c.l.b16 %v101
    %v406 = vunpack.c.h.b16 %v101
    %v407 = vunpack.c.l.b16 %v102
    %v408 = vunpack.c.h.b16 %v102
    %v409 = vunpack.c.l.b16 %v103
    %v410 = vunpack.c.h.b16 %v103
    %v411 = vunpack.c.l.b16 %v104
    %v412 = vunpack.c.h.b16 %v104
    %v413 = vunpack.c.l.b16 %v105
    %v414 = vunpack.c.h.b16 %v105
    %v415 = vunpack.c.l.b16 %v106
    %v416 = vunpack.c.h.b16 %v106
    %v417 = vunpack.c.l.b16 %v107
    %v418 = vunpack.c.h.b16 %v107
    %v419 = vunpack.c.l.b16 %v108
    %v420 = vunpack.c.h.b16 %v108
    %v421 = vunpack.c.l.b16 %v109
    %v422 = vunpack.c.h.b16 %v109
    %v423 = vunpack.c.l.b16 %v110
    %v424 = vunpack.c.h.b16 %v110
    %v425 = vunpack.c.l.b16 %v111
    %v426 = vunpack.c.h.b16 %v111
    %v427 = vunpack.c.l.b16 %v112
    %v428 = vunpack.c.h.b16 %v112
    %v429 = vunpack.c.l.b16 %v113
    %v430 = vunpack.c.h.b16 %v113
    %v431 = vunpack.c.l.b16 %v114
    %v432 = vunpack.c.h.b16 %v114
    %v433 = vunpack.c.l.b16 %v115
    %v434 = vunpack.c.h.b16 %v115
    %v435 = vunpack.c.l.b16 %v116
    %v436 = vunpack.c.h.b16 %v116
    %v437 = vunpack.c.l.b16 %v117
    %v438 = vunpack.c.h.b16 %v117
    %v439 = vunpack.c.l.b16 %v118
    %v440 = vunpack.c.h.b16 %v118
    %v441 = vunpack.c.l.b16 %v119
    %v442 = vunpack.c.h.b16 %v119
    %v443 = vunpack.c.l.b16 %v120
    %v444 = vunpack.c.h.b16 %v120
    %v445 = vunpack.c.l.b16 %v121
    %v446 = vunpack.c.h.b16 %v121
    %v447 = vunpack.c.l.b16 %v122
    %v448 = vunpack.c.h.b16 %v122
    %v449 = vunpack.c.l.b16 %v123
    %v450 = vunpack.c.h.b16 %v123
    %v451 = vunpack.c.l.b16 %v124
    %v452 = vunpack.c.h.b16 %v124
    %v453 = vunpack.c.l.b16 %v125
    %v454 = vunpack.c.h.b16 %v125
    %v455 = vunpack.c.l.b16 %v126
    %v456 = vunpack.c.h.b16 %v126
    %v457 = vunpack.c.l.b16 %v127
    %v458 = vunpack.c.h.b16 %v127
    %v459 = vunpack.c.l.b16 %v128
    %v460 = vunpack.c.h.b16 %v128
    %v461 = vunpack.c.l.b16 %v129
    %v462 = vunpack.c.h.b16 %v129
    %v463 = vunpack.c.l.b16 %v130
    %v464 = vunpack.c.h.b16 %v130
    %v465 = vunpack.c.l.b16 %v131
    %v466 = vunpack.c.h.b16 %v131
    %v467 = vunpack.c.l.b16 %v132
    %v468 = vunpack.c.h.b16 %v132
    %v469 = vunpack.c.l.b16 %v133
    %v470 = vunpack.c.h.b16 %v133
    %v471 = vunpack.c.l.b16 %v134
    %v472 = vunpack.c.h.b16 %v134
    %v473 = vunpack.c.l.b16 %v135
    %v474 = vunpack.c.h.b16 %v135
    %v475 = vunpack.c.l.b16 %v136
    %v476 = vunpack.c.h.b16 %v136
    %v477 = vunpack.c.l.b16 %v137
    %v478 = vunpack.c.h.b16 %v137
    %v479 = vunpack.c.l.b16 %v138
    %v480 = vunpack.c.h.b16 %v138
    %v481 = vunpack.c.l.b16 %v139
    %v482 = vunpack.c.h.b16 %v139
    %v483 = vunpack.c.l.b16 %v140
    %v484 = vunpack.c.h.b16 %v140
    %v485 = vunpack.c.l.b16 %v141
    %v486 = vunpack.c.h.b16 %v141
    %v487 = vunpack.c.l.b16 %v142
    %v488 = vunpack.c.h.b16 %v142
    %v489 = vunpack.c.l.b16 %v143
    %v490 = vunpack.c.h.b16 %v143
    %v491 = vunpack.c.l.b16 %v144
    %v492 = vunpack.c.h.b16 %v144
    %v493 = vunpack.c.l.b16 %v145
    %v494 = vunpack.c.h.b16 %v145
    %v495 = vunpack.c.l.b16 %v146
    %v496 = vunpack.c.h.b16 %v146
    %v497 = vunpack.c.l.b16 %v147
    %v498 = vunpack.c.h.b16 %v147
    %v499 = vunpack.c.l.b16 %v148
    %v500 = vunpack.c.h.b16 %v148
    %v501 = vunpack.c.l.b16 %v149
    %v502 = vunpack.c.h.b16 %v149
    %v503 = vunpack.c.l.b16 %v150
    %v504 = vunpack.c.h.b16 %v150
    %v505 = vunpack.c.l.b16 %v151
    %v506 = vunpack.c.h.b16 %v151
    %v507 = vunpack.c.l.b16 %v152
    %v508 = vunpack.c.h.b16 %v152
    %v509 = vunpack.c.l.b16 %v153
    %v510 = vunpack.c.h.b16 %v153
    %v511 = vunpack.c.l.b16 %v154
    %v512 = vunpack.c.h.b16 %v154
    %v513 = vunpack.c.l.b16 %v155
    %v514 = vunpack.c.h.b16 %v155
    %v515 = vunpack.c.l.b16 %v156
    %v516 = vunpack.c.h.b16 %v156
    %v517 = vunpack.c.l.b16 %v157
    %v518 = vunpack.c.h.b16 %v157
    %v519 = vunpack.c.l.b16 %v158
    %v520 = vunpack.c.h.b16 %v158
    %v521 = vunpack.c.l.b16 %v159
    %v522 = vunpack.c.h.b16 %v159
    %v523 = vunpack.c.l.b16 %v160
    %v524 = vunpack.c.h.b16 %v160
    %v525 = vunpack.c.l.b16 %v161
    %v526 = vunpack.c.h.b16 %v161
    %v527 = vunpack.c.l.b16 %v162
    %v528 = vunpack.c.h.b16 %v162
    %v529 = vunpack.c.l.b16 %v163
    %v530 = vunpack.c.h.b16 %v163
    %v531 = vunpack.c.l.b16 %v164
    %v532 = vunpack.c.h.b16 %v164
    %v533 = vunpack.c.l.b16 %v165
    %v534 = vunpack.c.h.b16 %v165
    %v535 = vunpack.c.l.b16 %v166
    %v536 = vunpack.c.h.b16 %v166
    %v537 = vunpack.c.l.b16 %v167
    %v538 = vunpack.c.h.b16 %v167
    %v539 = vunpack.c.l.b16 %v168
    %v540 = vunpack.c.h.b16 %v168
    %v541 = vunpack.c.l.b16 %v169
    %v542 = vunpack.c.h.b16 %v169
    %v543 = vunpack.c.l.b16 %v170
    %v544 = vunpack.c.h.b16 %v170
    %v545 = vunpack.c.l.b16 %v171
    %v546 = vunpack.c.h.b16 %v171
    %v547 = vunpack.c.l.b16 %v172
    %v548 = vunpack.c.h.b16 %v172
    %v549 = vunpack.c.l.b16 %v173
    %v550 = vunpack.c.h.b16 %v173
    %v551 = vunpack.c.l.b16 %v174
    %v552 = vunpack.c.h.b16 %v174
    %v553 = vunpack.c.l.b16 %v175
    %v554 = vunpack.c.h.b16 %v175
    %v555 = vunpack.c.l.b16 %v176
    %v556 = vunpack.c.h.b16 %v176
    %v557 = vunpack.c.l.b16 %v177
    %v558 = vunpack.c.h.b16 %v177
    %v559 = vunpack.c.l.b16 %v178
    %v560 = vunpack.c.h.b16 %v178
    %v561 = vunpack.c.l.b16 %v179
    %v562 = vunpack.c.h.b16 %v179
    %v563 = vunpack.c.l.b16 %v180
    %v564 = vunpack.c.h.b16 %v180
    %v565 = vunpack.c.l.b16 %v181
    %v566 = vunpack.c.h.b16 %v181
    %v567 = vunpack.c.l.b16 %v182
    %v568 = vunpack.c.h.b16 %v182
    %v569 = vunpack.c.l.b16 %v183
    %v570 = vunpack.c.h.b16 %v183
    %v571 = vunpack.c.l.b16 %v184
    %v572 = vunpack.c.h.b16 %v184
    %v573 = vunpack.c.l.b16 %v185
    %v574 = vunpack.c.h.b16 %v185
    %v575 = vunpack.c.l.b16 %v186
    %v576 = vunpack.c.h.b16 %v186
    %v577 = vpack.c.b16 %v329, %v321
    %v578 = vpack.c.b16 %v330, %v322
    %v579 = vpack.c.b16 %v331, %v323
    %v580 = vpack.c.b16 %v332, %v324
    %v581 = vpack.c.b16 %v333, %v325
    %v582 = vpack.c.b16 %v334, %v326
    %v583 = vpack.c.b16 %v335, %v327
    %v584 = vpack.c.b16 %v336, %v328
    %v585 = vpack.c.b16 %v345, %v337
    %v586 = vpack.c.b16 %v346, %v338
    %v587 = vpack.c.b16 %v347, %v339
    %v588 = vpack.c.b16 %v348, %v340
    %v589 = vpack.c.b16 %v349, %v341
    %v590 = vpack.c.b16 %v350, %v342
    %v591 = vpack.c.b16 %v351, %v343
    %v592 = vpack.c.b16 %v352, %v344
    %v593 = vpack.c.b16 %v361, %v353
    %v594 = vpack.c.b16 %v362, %v354
    %v595 = vpack.c.b16 %v363, %v355
    %v596 = vpack.c.b16 %v364, %v356
    %v597 = vpack.c.b16 %v365, %v357
    %v598 = vpack.c.b16 %v366, %v358
    %v599 = vpack.c.b16 %v367, %v359
    %v600 = vpack.c.b16 %v368, %v360
    %v601 = vpack.c.b16 %v377, %v369
    %v602 = vpack.c.b16 %v378, %v370
    %v603 = vpack.c.b16 %v379, %v371
    %v604 = vpack.c.b16 %v380, %v372
    %v605 = vpack.c.b16 %v381, %v373
    %v606 = vpack.c.b16 %v382, %v374
    %v607 = vpack.c.b16 %v383, %v375
    %v608 = vpack.c.b16 %v384, %v376
    %v609 = vpack.c.b16 %v393, %v385
    %v610 = vpack.c.b16 %v394, %v386
    %v611 = vpack.c.b16 %v395, %v387
    %v612 = vpack.c.b16 %v396, %v388
    %v613 = vpack.c.b16 %v397, %v389
    %v614 = vpack.c.b16 %v398, %v390
    %v615 = vpack.c.b16 %v399, %v391
    %v616 = vpack.c.b16 %v400, %v392
    %v617 = vpack.c.b16 %v409, %v401
    %v618 = vpack.c.b16 %v410, %v402
    %v619 = vpack.c.b16 %v411, %v403
    %v620 = vpack.c.b16 %v412, %v404
    %v621 = vpack.c.b16 %v413, %v405
    %v622 = vpack.c.b16 %v414, %v406
    %v623 = vpack.c.b16 %v415, %v407
    %v624 = vpack.c.b16 %v416, %v408
    %v625 = vpack.c.b16 %v425, %v417
    %v626 = vpack.c.b16 %v426, %v418
    %v627 = vpack.c.b16 %v427, %v419
    %v628 = vpack.c.b16 %v428, %v420
    %v629 = vpack.c.b16 %v429, %v421
    %v630 = vpack.c.b16 %v430, %v422
    %v631 = vpack.c.b16 %v431, %v423
    %v632 = vpack.c.b16 %v432, %v424
    %v633 = vpack.c.b16 %v441, %v433
    %v634 = vpack.c.b16 %v442, %v434
    %v635 = vpack.c.b16 %v443, %v435
    %v636 = vpack.c.b16 %v444, %v436
    %v637 = vpack.c.b16 %v445, %v437
    %v638 = vpack.c.b16 %v446, %v438
    %v639 = vpack.c.b16 %v447, %v439
    %v640 = vpack.c.b16 %v448, %v440
    %v641 = vpack.c.b16 %v457, %v449
    %v642 = vpack.c.b16 %v458, %v450
    %v643 = vpack.c.b16 %v459, %v451
    %v644 = vpack.c.b16 %v460, %v452
    %v645 = vpack.c.b16 %v461, %v453
    %v646 = vpack.c.b16 %v462, %v454
    %v647 = vpack.c.b16 %v463, %v455
    %v648 = vpack.c.b16 %v464, %v456
    %v649 = vpack.c.b16 %v473, %v465
    %v650 = vpack.c.b16 %v474, %v466
    %v651 = vpack.c.b16 %v475, %v467
    %v652 = vpack.c.b16 %v476, %v468
    %v653 = vpack.c.b16 %v477, %v469
    %v654 = vpack.c.b16 %v478, %v470
    %v655 = vpack.c.b16 %v479, %v471
    %v656 = vpack.c.b16 %v480, %v472
    %v657 = vpack.c.b16 %v489, %v481
    %v658 = vpack.c.b16 %v490, %v482
    %v659 = vpack.c.b16 %v491, %v483
    %v660 = vpack.c.b16 %v492, %v484
    %v661 = vpack.c.b16 %v493, %v485
    %v662 = vpack.c.b16 %v494, %v486
    %v663 = vpack.c.b16 %v495, %v487
    %v664 = vpack.c.b16 %v496, %v488
    %v665 = vpack.c.b16 %v505, %v497
    %v666 = vpack.c.b16 %v506, %v498
    %v667 = vpack.c.b16 %v507, %v499
    %v668 = vpack.c.b16 %v508, %v500
    %v669 = vpack.c.b16 %v509, %v501
    %v670 = vpack.c.b16 %v510, %v502
    %v671 = vpack.c.b16 %v511, %v503
    %v672 = vpack.c.b16 %v512, %v504
    %v673 = vpack.c.b16 %v521, %v513
    %v674 = vpack.c.b16 %v522, %v514
    %v675 = vpack.c.b16 %v523, %v515
    %v676 = vpack.c.b16 %v524, %v516
    %v677 = vpack.c.b16 %v525, %v517
    %v678 = vpack.c.b16 %v526, %v518
    %v679 = vpack.c.b16 %v527, %v519
    %v680 = vpack.c.b16 %v528, %v520
    %v681 = vpack.c.b16 %v537, %v529
    %v682 = vpack.c.b16 %v538, %v530
    %v683 = vpack.c.b16 %v539, %v531
    %v684 = vpack.c.b16 %v540, %v532
    %v685 = vpack.c.b16 %v541, %v533
    %v686 = vpack.c.b16 %v542, %v534
    %v687 = vpack.c.b16 %v543, %v535
    %v688 = vpack.c.b16 %v544, %v536
    %v689 = vpack.c.b16 %v553, %v545
    %v690 = vpack.c.b16 %v554, %v546
    %v691 = vpack.c.b16 %v555, %v547
    %v692 = vpack.c.b16 %v556, %v548
    %v693 = vpack.c.b16 %v557, %v549
    %v694 = vpack.c.b16 %v558, %v550
    %v695 = vpack.c.b16 %v559, %v551
    %v696 = vpack.c.b16 %v560, %v552
    %v697 = vpack.c.b16 %v569, %v561
    %v698 = vpack.c.b16 %v570, %v562
    %v699 = vpack.c.b16 %v571, %v563
    %v700 = vpack.c.b16 %v572, %v564
    %v701 = vpack.c.b16 %v573, %v565
    %v702 = vpack.c.b16 %v574, %v566
    %v703 = vpack.c.b16 %v575, %v567
    %v704 = vpack.c.b16 %v576, %v568
    %833 = vmatpush.bf16.msra.mxu0 %v633
    %834 = vmatpush.bf16.msra.mxu0 %v625
    %835 = vmatpush.bf16.msra.mxu0 %v617
    %836 = vmatpush.bf16.msra.mxu0 %v609
    %837 = vmatpush.bf16.msra.mxu0 %v601
    %838 = vmatpush.bf16.msra.mxu0 %v593
    %839 = vmatpush.bf16.msra.mxu0 %v585
    %840 = vmatpush.bf16.msra.mxu0 %v577
    %841 = vmatmul.bf16.gmra.mxu0 %v189
    %v842 = vpop.f32.mrf.mxu0
    %v843 = vadd.f32 0.0, %v842
    %v844 = vpop.f32.mrf.mxu0
    %845 = vdwg.mxu0
    %846 = vmatpush.bf16.msra.mxu0 %v697
    %847 = vmatpush.bf16.msra.mxu0 %v689
    %848 = vmatpush.bf16.msra.mxu0 %v681
    %849 = vmatpush.bf16.msra.mxu0 %v673
    %850 = vmatpush.bf16.msra.mxu0 %v665
    %851 = vmatpush.bf16.msra.mxu0 %v657
    %852 = vmatpush.bf16.msra.mxu0 %v649
    %853 = vmatpush.bf16.msra.mxu0 %v641
    %854 = vmatmul.bf16.gmra.mxu0 %v190
    %v855 = vpop.f32.mrf.mxu0
    %v856 = vadd.f32 %v843, %v855
    %v857 = vpop.f32.mrf.mxu0
    %858 = vdwg.mxu0
    %859 = vmatpush.bf16.msra.mxu0 %v634
    %860 = vmatpush.bf16.msra.mxu0 %v626
    %861 = vmatpush.bf16.msra.mxu0 %v618
    %862 = vmatpush.bf16.msra.mxu0 %v610
    %863 = vmatpush.bf16.msra.mxu0 %v602
    %864 = vmatpush.bf16.msra.mxu0 %v594
    %865 = vmatpush.bf16.msra.mxu0 %v586
    %866 = vmatpush.bf16.msra.mxu0 %v578
    %867 = vmatmul.bf16.gmra.mxu0 %v189
    %v868 = vpop.f32.mrf.mxu0
    %v869 = vadd.f32 0.0, %v868
    %v870 = vpop.f32.mrf.mxu0
    %871 = vdwg.mxu0
    %872 = vmatpush.bf16.msra.mxu0 %v698
    %873 = vmatpush.bf16.msra.mxu0 %v690
    %874 = vmatpush.bf16.msra.mxu0 %v682
    %875 = vmatpush.bf16.msra.mxu0 %v674
    %876 = vmatpush.bf16.msra.mxu0 %v666
    %877 = vmatpush.bf16.msra.mxu0 %v658
    %878 = vmatpush.bf16.msra.mxu0 %v650
    %879 = vmatpush.bf16.msra.mxu0 %v642
    %880 = vmatmul.bf16.gmra.mxu0 %v190
    %v881 = vpop.f32.mrf.mxu0
    %v882 = vadd.f32 %v869, %v881
    %v883 = vpop.f32.mrf.mxu0
    %884 = vdwg.mxu0
    %885 = vmatpush.bf16.msra.mxu0 %v635
    %886 = vmatpush.bf16.msra.mxu0 %v627
    %887 = vmatpush.bf16.msra.mxu0 %v619
    %888 = vmatpush.bf16.msra.mxu0 %v611
    %889 = vmatpush.bf16.msra.mxu0 %v603
    %890 = vmatpush.bf16.msra.mxu0 %v595
    %891 = vmatpush.bf16.msra.mxu0 %v587
    %892 = vmatpush.bf16.msra.mxu0 %v579
    %893 = vmatmul.bf16.gmra.mxu0 %v189
    %v894 = vpop.f32.mrf.mxu0
    %v895 = vadd.f32 0.0, %v894
    %v896 = vpop.f32.mrf.mxu0
    %897 = vdwg.mxu0
    %898 = vmatpush.bf16.msra.mxu0 %v699
    %899 = vmatpush.bf16.msra.mxu0 %v691
    %900 = vmatpush.bf16.msra.mxu0 %v683
    %901 = vmatpush.bf16.msra.mxu0 %v675
    %902 = vmatpush.bf16.msra.mxu0 %v667
    %903 = vmatpush.bf16.msra.mxu0 %v659
    %904 = vmatpush.bf16.msra.mxu0 %v651
    %905 = vmatpush.bf16.msra.mxu0 %v643
    %906 = vmatmul.bf16.gmra.mxu0 %v190
    %v907 = vpop.f32.mrf.mxu0
    %v908 = vadd.f32 %v895, %v907
    %v909 = vpop.f32.mrf.mxu0
    %910 = vdwg.mxu0
    %911 = vmatpush.bf16.msra.mxu0 %v636
    %912 = vmatpush.bf16.msra.mxu0 %v628
    %913 = vmatpush.bf16.msra.mxu0 %v620
    %914 = vmatpush.bf16.msra.mxu0 %v612
    %915 = vmatpush.bf16.msra.mxu0 %v604
    %916 = vmatpush.bf16.msra.mxu0 %v596
    %917 = vmatpush.bf16.msra.mxu0 %v588
    %918 = vmatpush.bf16.msra.mxu0 %v580
    %919 = vmatmul.bf16.gmra.mxu0 %v189
    %v920 = vpop.f32.mrf.mxu0
    %v921 = vadd.f32 0.0, %v920
    %v922 = vpop.f32.mrf.mxu0
    %923 = vdwg.mxu0
    %924 = vmatpush.bf16.msra.mxu0 %v700
    %925 = vmatpush.bf16.msra.mxu0 %v692
    %926 = vmatpush.bf16.msra.mxu0 %v684
    %927 = vmatpush.bf16.msra.mxu0 %v676
    %928 = vmatpush.bf16.msra.mxu0 %v668
    %929 = vmatpush.bf16.msra.mxu0 %v660
    %930 = vmatpush.bf16.msra.mxu0 %v652
    %931 = vmatpush.bf16.msra.mxu0 %v644
    %932 = vmatmul.bf16.gmra.mxu0 %v190
    %v933 = vpop.f32.mrf.mxu0
    %v934 = vadd.f32 %v921, %v933
    %v935 = vpop.f32.mrf.mxu0
    %936 = vdwg.mxu0
    %937 = vmatpush.bf16.msra.mxu0 %v637
    %938 = vmatpush.bf16.msra.mxu0 %v629
    %939 = vmatpush.bf16.msra.mxu0 %v621
    %940 = vmatpush.bf16.msra.mxu0 %v613
    %941 = vmatpush.bf16.msra.mxu0 %v605
    %942 = vmatpush.bf16.msra.mxu0 %v597
    %943 = vmatpush.bf16.msra.mxu0 %v589
    %944 = vmatpush.bf16.msra.mxu0 %v581
    %945 = vmatmul.bf16.gmra.mxu0 %v189
    %v946 = vpop.f32.mrf.mxu0
    %v947 = vadd.f32 0.0, %v946
    %v948 = vpop.f32.mrf.mxu0
    %949 = vdwg.mxu0
    %950 = vmatpush.bf16.msra.mxu0 %v701
    %951 = vmatpush.bf16.msra.mxu0 %v693
    %952 = vmatpush.bf16.msra.mxu0 %v685
    %953 = vmatpush.bf16.msra.mxu0 %v677
    %954 = vmatpush.bf16.msra.mxu0 %v669
    %955 = vmatpush.bf16.msra.mxu0 %v661
    %956 = vmatpush.bf16.msra.mxu0 %v653
    %957 = vmatpush.bf16.msra.mxu0 %v645
    %958 = vmatmul.bf16.gmra.mxu0 %v190
    %v959 = vpop.f32.mrf.mxu0
    %v960 = vadd.f32 %v947, %v959
    %v961 = vpop.f32.mrf.mxu0
    %962 = vdwg.mxu0
    %963 = vmatpush.bf16.msra.mxu0 %v638
    %964 = vmatpush.bf16.msra.mxu0 %v630
    %965 = vmatpush.bf16.msra.mxu0 %v622
    %966 = vmatpush.bf16.msra.mxu0 %v614
    %967 = vmatpush.bf16.msra.mxu0 %v606
    %968 = vmatpush.bf16.msra.mxu0 %v598
    %969 = vmatpush.bf16.msra.mxu0 %v590
    %970 = vmatpush.bf16.msra.mxu0 %v582
    %971 = vmatmul.bf16.gmra.mxu0 %v189
    %v972 = vpop.f32.mrf.mxu0
    %v973 = vadd.f32 0.0, %v972
    %v974 = vpop.f32.mrf.mxu0
    %975 = vdwg.mxu0
    %976 = vmatpush.bf16.msra.mxu0 %v702
    %977 = vmatpush.bf16.msra.mxu0 %v694
    %978 = vmatpush.bf16.msra.mxu0 %v686
    %979 = vmatpush.bf16.msra.mxu0 %v678
    %980 = vmatpush.bf16.msra.mxu0 %v670
    %981 = vmatpush.bf16.msra.mxu0 %v662
    %982 = vmatpush.bf16.msra.mxu0 %v654
    %983 = vmatpush.bf16.msra.mxu0 %v646
    %984 = vmatmul.bf16.gmra.mxu0 %v190
    %v985 = vpop.f32.mrf.mxu0
    %v986 = vadd.f32 %v973, %v985
    %v987 = vpop.f32.mrf.mxu0
    %988 = vdwg.mxu0
    %989 = vmatpush.bf16.msra.mxu0 %v639
    %990 = vmatpush.bf16.msra.mxu0 %v631
    %991 = vmatpush.bf16.msra.mxu0 %v623
    %992 = vmatpush.bf16.msra.mxu0 %v615
    %993 = vmatpush.bf16.msra.mxu0 %v607
    %994 = vmatpush.bf16.msra.mxu0 %v599
    %995 = vmatpush.bf16.msra.mxu0 %v591
    %996 = vmatpush.bf16.msra.mxu0 %v583
    %997 = vmatmul.bf16.gmra.mxu0 %v189
    %v998 = vpop.f32.mrf.mxu0
    %v999 = vadd.f32 0.0, %v998
    %v1000 = vpop.f32.mrf.mxu0
    %1001 = vdwg.mxu0
    %1002 = vmatpush.bf16.msra.mxu0 %v703
    %1003 = vmatpush.bf16.msra.mxu0 %v695
    %1004 = vmatpush.bf16.msra.mxu0 %v687
    %1005 = vmatpush.bf16.msra.mxu0 %v679
    %1006 = vmatpush.bf16.msra.mxu0 %v671
    %1007 = vmatpush.bf16.msra.mxu0 %v663
    %1008 = vmatpush.bf16.msra.mxu0 %v655
    %1009 = vmatpush.bf16.msra.mxu0 %v647
    %1010 = vmatmul.bf16.gmra.mxu0 %v190
    %v1011 = vpop.f32.mrf.mxu0
    %v1012 = vadd.f32 %v999, %v1011
    %v1013 = vpop.f32.mrf.mxu0
    %1014 = vdwg.mxu0
    %1015 = vmatpush.bf16.msra.mxu0 %v640
    %1016 = vmatpush.bf16.msra.mxu0 %v632
    %1017 = vmatpush.bf16.msra.mxu0 %v624
    %1018 = vmatpush.bf16.msra.mxu0 %v616
    %1019 = vmatpush.bf16.msra.mxu0 %v608
    %1020 = vmatpush.bf16.msra.mxu0 %v600
    %1021 = vmatpush.bf16.msra.mxu0 %v592
    %1022 = vmatpush.bf16.msra.mxu0 %v584
    %1023 = vmatmul.bf16.gmra.mxu0 %v189
    %v1024 = vpop.f32.mrf.mxu0
    %v1025 = vadd.f32 0.0, %v1024
    %v1026 = vpop.f32.mrf.mxu0
    %1027 = vdwg.mxu0
    %1028 = vmatpush.bf16.msra.mxu0 %v704
    %1029 = vmatpush.bf16.msra.mxu0 %v696
    %1030 = vmatpush.bf16.msra.mxu0 %v688
    %1031 = vmatpush.bf16.msra.mxu0 %v680
    %1032 = vmatpush.bf16.msra.mxu0 %v672
    %1033 = vmatpush.bf16.msra.mxu0 %v664
    %1034 = vmatpush.bf16.msra.mxu0 %v656
    %1035 = vmatpush.bf16.msra.mxu0 %v648
    %1036 = vmatmul.bf16.gmra.mxu0 %v190
    %v1037 = vpop.f32.mrf.mxu0
    %v1038 = vadd.f32 %v1025, %v1037
    %v1039 = vpop.f32.mrf.mxu0
    %1040 = vdwg.mxu0
    %vm1041 = vcmask 1043456
    %v1042 = vsel %vm1041, %v856, -inf
    %v1043 = vsel %vm1041, %v882, -inf
    %v1044 = vsel %vm1041, %v908, -inf
    %v1045 = vsel %vm1041, %v934, -inf
    %v1046 = vsel %vm1041, %v960, -inf
    %v1047 = vmax.f32 %v1042, %v1046
    %v1048 = vsel %vm1041, %v986, -inf
    %v1049 = vmax.f32 %v1043, %v1048
    %v1050 = vsel %vm1041, %v1012, -inf
    %v1051 = vmax.f32 %v1044, %v1050
    %v1052 = vsel %vm1041, %v1038, -inf
    %v1053 = vmax.f32 %v1045, %v1052
    %v1054 = vmax.f32 %v1047, %v1049
    %v1055 = vmax.f32 %v1051, %v1053
    %v1056 = vmax.f32 %v1054, %v1055
    %1057 = vmax.xlane.f32.xlu0 %v1056
    %v1058 = vpop.xlane.xlu0 %1057
    %v1059 = vadd.f32 %v1058, 0.0001
    %v1060 = vrcp.pop %v1059
    %v1061 = vld [vmem:[#allocation5] sm:$0xff]
    %v1062 = vld [vmem:[#allocation5 + $0x8] sm:$0xff]
    %v1063 = vunpack.c.l.bf16 %v1061
    %v1064 = vunpack.c.h.bf16 %v1061
    %v1065 = vunpack.c.l.bf16 %v1062
    %v1066 = vunpack.c.h.bf16 %v1062
    %v1067 = vmul.f32 %v856, %v1060
    %v1068 = vmul.f32 %v882, %v1060
    %v1069 = vmul.f32 %v908, %v1060
    %v1070 = vmul.f32 %v934, %v1060
    %v1071 = vmul.f32 %v960, %v1060
    %v1072 = vmul.f32 %v986, %v1060
    %v1073 = vmul.f32 %v1012, %v1060
    %v1074 = vmul.f32 %v1038, %v1060
    %1079 = vst [vmem:[#allocation1] ss:$2 sm:$0xff] %v1063
    %s1080 = scalar_lea.vmem [#allocation1], 16
    %1081 = vst [vmem:[%s1080] ss:$2 sm:$0xff] %v1064
    %s1082 = scalar_lea.vmem [#allocation1], 32
    %1083 = vst [vmem:[%s1082] ss:$2 sm:$0xff] %v1065
    %s1084 = scalar_lea.vmem [#allocation1], 48
    %1085 = vst [vmem:[%s1084] ss:$2 sm:$0xff] %v1066
    %v1086 = vld.sshfl [vmem:[#allocation1] sm:$0xff pattern:$0x75316420]
    %v1087 = vld.sshfl [vmem:[#allocation1 + $0x8] sm:$0xff pattern:$0x75316420]
    %v1088 = vld.sshfl [vmem:[#allocation1 + $0x10] sm:$0xff pattern:$0x75316420]
    %v1089 = vld.sshfl [vmem:[#allocation1 + $0x18] sm:$0xff pattern:$0x75316420]
    %v1090 = vld.sshfl [vmem:[#allocation1 + $0x20] sm:$0xff pattern:$0x75316420]
    %v1091 = vld.sshfl [vmem:[#allocation1 + $0x28] sm:$0xff pattern:$0x75316420]
    %v1092 = vld.sshfl [vmem:[#allocation1 + $0x30] sm:$0xff pattern:$0x75316420]
    %v1093 = vld.sshfl [vmem:[#allocation1 + $0x38] sm:$0xff pattern:$0x75316420]
    %v1102 = vsub.f32 %v1067, %v1086
    %v1103 = vsub.f32 %v1068, %v1087
    %v1104 = vsub.f32 %v1069, %v1088
    %v1105 = vsub.f32 %v1070, %v1089
    %v1106 = vsub.f32 %v1071, %v1090
    %v1107 = vsub.f32 %v1072, %v1091
    %v1108 = vsub.f32 %v1073, %v1092
    %v1109 = vsub.f32 %v1074, %v1093
    %v1110 = vsub.f32 1.1, %v1063
    %v1111 = vsub.f32 1.1, %v1064
    %v1112 = vsub.f32 1.1, %v1065
    %v1113 = vsub.f32 1.1, %v1066
    %v1114 = vrcp.pop %v1110
    %v1115 = vrcp.pop %v1111
    %v1116 = vrcp.pop %v1112
    %v1117 = vrcp.pop %v1113
    %1122 = vst [vmem:[#allocation1] ss:$2 sm:$0xff] %v1114
    %s1123 = scalar_lea.vmem [#allocation1], 16
    %1124 = vst [vmem:[%s1123] ss:$2 sm:$0xff] %v1115
    %s1125 = scalar_lea.vmem [#allocation1], 32
    %1126 = vst [vmem:[%s1125] ss:$2 sm:$0xff] %v1116
    %s1127 = scalar_lea.vmem [#allocation1], 48
    %1128 = vst [vmem:[%s1127] ss:$2 sm:$0xff] %v1117
    %v1129 = vld.sshfl [vmem:[#allocation1] sm:$0xff pattern:$0x75316420]
    %v1130 = vld.sshfl [vmem:[#allocation1 + $0x8] sm:$0xff pattern:$0x75316420]
    %v1131 = vld.sshfl [vmem:[#allocation1 + $0x10] sm:$0xff pattern:$0x75316420]
    %v1132 = vld.sshfl [vmem:[#allocation1 + $0x18] sm:$0xff pattern:$0x75316420]
    %v1133 = vld.sshfl [vmem:[#allocation1 + $0x20] sm:$0xff pattern:$0x75316420]
    %v1134 = vld.sshfl [vmem:[#allocation1 + $0x28] sm:$0xff pattern:$0x75316420]
    %v1135 = vld.sshfl [vmem:[#allocation1 + $0x30] sm:$0xff pattern:$0x75316420]
    %v1136 = vld.sshfl [vmem:[#allocation1 + $0x38] sm:$0xff pattern:$0x75316420]
    %v1145 = vmul.f32 %v1102, %v1129
    %v1146 = vmul.f32 %v1103, %v1130
    %v1147 = vmul.f32 %v1104, %v1131
    %v1148 = vmul.f32 %v1105, %v1132
    %v1149 = vmul.f32 %v1106, %v1133
    %v1150 = vmul.f32 %v1107, %v1134
    %v1151 = vmul.f32 %v1108, %v1135
    %v1152 = vmul.f32 %v1109, %v1136
    %v1153 = vadd.f32 %v1145, 0.0001
    %v1154 = vadd.f32 %v1146, 0.0001
    %v1155 = vadd.f32 %v1147, 0.0001
    %v1156 = vadd.f32 %v1148, 0.0001
    %v1157 = vadd.f32 %v1149, 0.0001
    %v1158 = vadd.f32 %v1150, 0.0001
    %v1159 = vadd.f32 %v1151, 0.0001
    %v1160 = vadd.f32 %v1152, 0.0001
    %v1161 = vmul.f32 %v1153, %v1153
    %v1162 = vmul.f32 %v1154, %v1154
    %v1163 = vmul.f32 %v1155, %v1155
    %v1164 = vmul.f32 %v1156, %v1156
    %v1165 = vmul.f32 %v1157, %v1157
    %v1166 = vmul.f32 %v1158, %v1158
    %v1167 = vmul.f32 %v1159, %v1159
    %v1168 = vmul.f32 %v1160, %v1160
    %v1169 = vsel %vm1041, %v1161, 0.0
    %v1170 = vsel %vm1041, %v1162, 0.0
    %v1171 = vadd.f32 %v1169, %v1170
    %v1172 = vsel %vm1041, %v1163, 0.0
    %v1173 = vadd.f32 %v1171, %v1172
    %v1174 = vsel %vm1041, %v1164, 0.0
    %v1175 = vadd.f32 %v1173, %v1174
    %v1176 = vsel %vm1041, %v1165, 0.0
    %v1177 = vadd.f32 %v1175, %v1176
    %v1178 = vsel %vm1041, %v1166, 0.0
    %v1179 = vadd.f32 %v1177, %v1178
    %v1180 = vsel %vm1041, %v1167, 0.0
    %v1181 = vadd.f32 %v1179, %v1180
    %v1182 = vsel %vm1041, %v1168, 0.0
    %v1183 = vadd.f32 %v1181, %v1182
    %1184 = vadd.xlane.f32.xlu0 %v1183
    %v1185 = vpop.xlane.xlu0 %1184
    %v1186 = vsel %vm1041, %v1185, 0.0
    %v1187 = vrot.slane %v1186, 4
    %v1188 = vadd.f32 %v1186, %v1187
    %v1189 = vrot.slane %v1188, 2
    %v1190 = vadd.f32 %v1188, %v1189
    %v1191 = vrot.slane %v1190, 1
    %v1192 = vadd.f32 %v1190, %v1191
    %vm1193 = vcmask 0
    %1194 = vst.msk [vmem:[#allocation8] sm:$0x1] %vm1193, %v1192
    // Predicated region
    $region26: #{tpu_custom_call.1} parent=1 // pred_check
      _
    $region27: #{tpu_custom_call.1} parent=1 // pred_check_branch
      %1196 = sbr.rel (0) target = $region29
    $region28: #{tpu_custom_call.1} parent=1 // pred_region
      %1198 = vsyncadd [#allocation4], 0
      %s1200 = sshll.u32 [#allocation8], 4
      %s1201 = int_to_ptr.vmem [resolvable:$true] %s1200
      %s1202 = sshll.u32 %s3, 4
      %s1203 = int_to_ptr.hbm [resolvable:$true] %s1202
      %1205 = dma.vmem_to_hbm [thread:$0]  %s1201, 16, %s1203, [#allocation4]
    $region29: #{tpu_custom_call.1} parent=1 // pred_fallthru
      _
    // Predicated region
    $region30: #{tpu_custom_call.1} parent=1 // pred_check
      _
    $region31: #{tpu_custom_call.1} parent=1 // pred_check_branch
      %1207 = sbr.rel (0) target = $region33
    $region32: #{tpu_custom_call.1} parent=1 // pred_region
      %1209 = dma.done [#allocation4], 16
    $region33: #{tpu_custom_call.1} parent=1 // pred_fallthru
      _
    %1210 = vsyncpa [#allocation3], 1
    %1211 = vsyncpa [#allocation6], 1
    %1212 = vsyncpa [#allocation4], 1

</llo_original>
